<compile_context>
chip_gen: v7x
topology: tpu7x:2x2x1
jax: 0.10.0
libtpu: 0.0.40
codegen_flags: <defaults>
</compile_context>

<pallas_src>
import jax
import jax.numpy as jnp
from jax.experimental import pallas as pl
from jax.experimental.pallas import tpu as pltpu

HIDDEN = 100       # true hidden width from the PyTorch module
HIDDEN_PAD = 128   # lane-aligned hidden width
NEG_BIG = -1e30    # effectively -inf for the softmax mask (baked into b3 pad)


def _mlp_kernel(x_ref, w1_ref, b1_ref, w2_ref, b2_ref, w3_ref, b3_ref, o_ref):
    x = x_ref[...]                                            # (TB, 1) f32

    # fc1 + relu: K=1 contraction == outer product -> VPU broadcast multiply.
    h1 = jnp.maximum(x * w1_ref[...] + b1_ref[...], 0.0)      # (TB, 128) f32

    # fc2 + relu: bf16 MXU contraction, f32 accumulation.
    h2 = jnp.dot(h1.astype(jnp.bfloat16), w2_ref[...],
                 preferred_element_type=jnp.float32)
    h2 = jnp.maximum(h2 + b2_ref[...], 0.0)                   # (TB, 128) f32

    # fc3 into the lane-dense padded slab. The class mask is pre-baked into
    # b3: padded lanes carry -1e30 (and padded w3 columns are exactly zero),
    # so no iota/where is needed here.
    logits = jnp.dot(h2.astype(jnp.bfloat16), w3_ref[...],
                     preferred_element_type=jnp.float32)
    logits = logits + b3_ref[...]                             # (TB, OUT_W)

    # Numerically stable softmax; reciprocal goes to the EUP slot.
    m = jnp.max(logits, axis=-1, keepdims=True)
    e = jnp.exp(logits - m)                                   # padded cols -> 0
    denom = jnp.sum(e, axis=-1, keepdims=True)
    o_ref[...] = e * pl.reciprocal(denom, approx=True)


def _pad_params(params, out_w):
    """Pad (in,out)-layout params; w2/w3 in bf16, class mask baked into b3."""
    w1, b1 = params["w1"], params["b1"]
    w2, b2 = params["w2"], params["b2"]
    w3, b3 = params["w3"], params["b3"]
    H = w1.shape[1]
    T = w3.shape[1]
    w1p = jnp.zeros((1, HIDDEN_PAD), jnp.float32).at[:, :H].set(w1)
    b1p = jnp.zeros((1, HIDDEN_PAD), jnp.float32).at[:, :H].set(b1)
    w2p = jnp.zeros((HIDDEN_PAD, HIDDEN_PAD), jnp.bfloat16).at[:H, :H].set(
        w2.astype(jnp.bfloat16))
    b2p = jnp.zeros((1, HIDDEN_PAD), jnp.float32).at[:, :H].set(b2)
    # Padded w3 columns stay exactly zero; padded b3 lanes carry the mask.
    w3p = jnp.zeros((HIDDEN_PAD, out_w), jnp.bfloat16).at[:H, :T].set(
        w3.astype(jnp.bfloat16))
    b3p = jnp.full((1, out_w), NEG_BIG, jnp.float32).at[:, :T].set(b3)
    return w1p, b1p, w2p, b2p, w3p, b3p


def model_alpha_forward(x, params, *, tile_b=4096, return_padded=False):
    """x: (B, 1) float32. params: (in,out)-layout weights + (1,out) biases.

    If return_padded=True the raw (b_pad, out_w) lane-dense slab is returned
    (rows >= B and columns >= n_template are padding); this avoids the extra
    HBM round-trip of the final slice when the consumer can fuse it.
    """
    B = x.shape[0]
    T = params["w3"].shape[1]
    # 128-lane slab for small class counts; multiples of 256 when T > 128
    # (v6e/v7x MXU is 2x256x256 wide on the N dimension).
    out_w = 128 if T <= 128 else pl.cdiv(T, 256) * 256
    w1p, b1p, w2p, b2p, w3p, b3p = _pad_params(params, out_w)

    # Sublane-aligned row tile; big enough to amortize per-step overhead,
    # never bigger than the (padded-up) batch.
    b_ceil = pl.cdiv(B, 8) * 8
    tile_b = max(8, (min(int(tile_b), b_ceil) // 8) * 8)
    # Keep >= 2 grid steps when the batch allows it so the "parallel" batch
    # axis can shard across both v7x TensorCores (cheap everywhere else).
    if b_ceil >= 16:
        tile_b = min(tile_b, pl.cdiv(pl.cdiv(b_ceil, 2), 8) * 8)
    b_pad = pl.cdiv(b_ceil, tile_b) * tile_b
    if b_pad != B:
        x = jnp.pad(x, ((0, b_pad - B), (0, 0)))
    grid = (b_pad // tile_b,)

    pinned = lambda shape: pl.BlockSpec(shape, lambda i: (0, 0))

    flops = (2 * b_pad * (HIDDEN_PAD * HIDDEN_PAD + HIDDEN_PAD * out_w)
             + 2 * b_pad * HIDDEN_PAD)
    bytes_accessed = (4 * b_pad * 1 + 4 * b_pad * out_w
                      + 2 * (HIDDEN_PAD * HIDDEN_PAD + HIDDEN_PAD * out_w)
                      + 4 * (3 * HIDDEN_PAD + out_w))
    cost = pl.CostEstimate(flops=flops,
                           transcendentals=b_pad * (out_w + 1),
                           bytes_accessed=bytes_accessed)

    out = pl.pallas_call(
        _mlp_kernel,
        out_shape=jax.ShapeDtypeStruct((b_pad, out_w), jnp.float32),
        grid=grid,
        in_specs=[
            pl.BlockSpec((tile_b, 1), lambda i: (i, 0)),   # x rows
            pinned((1, HIDDEN_PAD)),                       # w1 (f32, VPU)
            pinned((1, HIDDEN_PAD)),                       # b1
            pinned((HIDDEN_PAD, HIDDEN_PAD)),              # w2 (bf16)
            pinned((1, HIDDEN_PAD)),                       # b2
            pinned((HIDDEN_PAD, out_w)),                   # w3 (bf16)
            pinned((1, out_w)),                            # b3 (mask baked in)
        ],
        out_specs=pl.BlockSpec((tile_b, out_w), lambda i: (i, 0)),
        compiler_params=pltpu.CompilerParams(
            dimension_semantics=("parallel",)),
        cost_estimate=cost,
    )(x, w1p, b1p, w2p, b2p, w3p, b3p)

    if return_padded:
        return out
    return out[:B, :T]


def init_params(key, n_template, hidden=HIDDEN):
    """Deterministic synthetic init, PyTorch-Linear-like uniform bounds."""
    ks = jax.random.split(key, 6)

    def lin(kw, kb, fan_in, fan_out):
        bound = 1.0 / jnp.sqrt(float(fan_in))
        w = jax.random.uniform(kw, (fan_in, fan_out), jnp.float32, -bound, bound)
        b = jax.random.uniform(kb, (1, fan_out), jnp.float32, -bound, bound)
        return w, b

    w1, b1 = lin(ks[0], ks[1], 1, hidden)
    w2, b2 = lin(ks[2], ks[3], hidden, hidden)
    w3, b3 = lin(ks[4], ks[5], hidden, n_template)
    return {"w1": w1, "b1": b1, "w2": w2, "b2": b2, "w3": w3, "b3": b3}


if __name__ == "__main__":
    key = jax.random.PRNGKey(0)
    k_x, k_p = jax.random.split(key)

    batch = 8
    n_template = 16

    x = jax.random.normal(k_x, (batch, 1), dtype=jnp.float32)
    params = init_params(k_p, n_template)

    out = model_alpha_forward(x, params)
    out = jax.block_until_ready(out)

    # Reference in plain JAX (f32 matmuls, exact divide); the kernel uses bf16
    # MXU inputs with f32 accumulation and an approx EUP reciprocal, so
    # tolerances are mildly relaxed.
    def ref(x, p):
        h = jnp.maximum(x @ p["w1"] + p["b1"], 0.0)
        h = jnp.maximum(h @ p["w2"] + p["b2"], 0.0)
        logits = h @ p["w3"] + p["b3"]
        return jax.nn.softmax(logits, axis=-1)

    expected = ref(x, params)
    assert out.shape == (batch, n_template)
    assert jnp.allclose(out, expected, atol=1e-2, rtol=1e-2)
    assert jnp.allclose(jnp.sum(out, axis=-1), 1.0, atol=5e-3)

    print("KERNEL_OK")
</pallas_src>

<mosaic_0001>
module attributes {stable_mosaic.version = 11 : i64} {
  func.func @_mlp_kernel(%arg0: i32, %arg1: memref<8x1xf32, #tpu.memory_space<vmem>>, %arg2: memref<1x128xf32, #tpu.memory_space<vmem>>, %arg3: memref<1x128xf32, #tpu.memory_space<vmem>>, %arg4: memref<128x128xbf16, #tpu.memory_space<vmem>>, %arg5: memref<1x128xf32, #tpu.memory_space<vmem>>, %arg6: memref<128x128xbf16, #tpu.memory_space<vmem>>, %arg7: memref<1x128xf32, #tpu.memory_space<vmem>>, %arg8: memref<8x128xf32, #tpu.memory_space<vmem>>) attributes {dimension_semantics = [#tpu.dimension_semantics<parallel>], iteration_bounds = array<i64: 1>, scalar_prefetch = 0 : i64, scratch_operands = 0 : i64, tpu.core_type = #tpu.core_type<tc>, window_params = [{transform_indices = @transform_0, window_bounds = array<i64: 8, 1>}, {pipeline_mode = #tpu.pipeline_mode<synchronous>, transform_indices = @transform_1, window_bounds = array<i64: 1, 128>}, {pipeline_mode = #tpu.pipeline_mode<synchronous>, transform_indices = @transform_2, window_bounds = array<i64: 1, 128>}, {pipeline_mode = #tpu.pipeline_mode<synchronous>, transform_indices = @transform_3, window_bounds = array<i64: 128, 128>}, {pipeline_mode = #tpu.pipeline_mode<synchronous>, transform_indices = @transform_4, window_bounds = array<i64: 1, 128>}, {pipeline_mode = #tpu.pipeline_mode<synchronous>, transform_indices = @transform_5, window_bounds = array<i64: 128, 128>}, {pipeline_mode = #tpu.pipeline_mode<synchronous>, transform_indices = @transform_6, window_bounds = array<i64: 1, 128>}, {transform_indices = @transform_7, window_bounds = array<i64: 8, 128>}]} {
    %c0 = arith.constant 0 : index
    %c0_0 = arith.constant 0 : index
    %0 = vector.load %arg1[%c0, %c0_0] : memref<8x1xf32, #tpu.memory_space<vmem>>, vector<8x1xf32>
    %c0_1 = arith.constant 0 : index
    %c0_2 = arith.constant 0 : index
    %1 = vector.load %arg2[%c0_1, %c0_2] : memref<1x128xf32, #tpu.memory_space<vmem>>, vector<1x128xf32>
    %2 = vector.broadcast %0 : vector<8x1xf32> to vector<8x128xf32>
    %3 = vector.broadcast %1 : vector<1x128xf32> to vector<8x128xf32>
    %4 = arith.mulf %2, %3 : vector<8x128xf32>
    %c0_3 = arith.constant 0 : index
    %c0_4 = arith.constant 0 : index
    %5 = vector.load %arg3[%c0_3, %c0_4] : memref<1x128xf32, #tpu.memory_space<vmem>>, vector<1x128xf32>
    %6 = vector.broadcast %5 : vector<1x128xf32> to vector<8x128xf32>
    %7 = arith.addf %4, %6 : vector<8x128xf32>
    %cst = arith.constant 0.000000e+00 : f32
    %8 = vector.broadcast %cst : f32 to vector<8x128xf32>
    %9 = arith.maximumf %7, %8 : vector<8x128xf32>
    %10 = arith.truncf %9 : vector<8x128xf32> to vector<8x128xbf16>
    %c0_5 = arith.constant 0 : index
    %c0_6 = arith.constant 0 : index
    %11 = vector.load %arg4[%c0_5, %c0_6] : memref<128x128xbf16, #tpu.memory_space<vmem>>, vector<128x128xbf16>
    %cst_7 = arith.constant dense<0.000000e+00> : vector<8x128xf32>
    %12 = tpu.matmul %10, %11, %cst_7 {dimension_numbers = #tpu.dot_dimension_numbers<[1], [0], [0], [1], [0, 0, 1, 1], [], []>} : vector<8x128xbf16>, vector<128x128xbf16>, vector<8x128xf32> -> vector<8x128xf32>
    %c0_8 = arith.constant 0 : index
    %c0_9 = arith.constant 0 : index
    %13 = vector.load %arg5[%c0_8, %c0_9] : memref<1x128xf32, #tpu.memory_space<vmem>>, vector<1x128xf32>
    %14 = vector.broadcast %13 : vector<1x128xf32> to vector<8x128xf32>
    %15 = arith.addf %12, %14 : vector<8x128xf32>
    %cst_10 = arith.constant 0.000000e+00 : f32
    %16 = vector.broadcast %cst_10 : f32 to vector<8x128xf32>
    %17 = arith.maximumf %15, %16 : vector<8x128xf32>
    %18 = arith.truncf %17 : vector<8x128xf32> to vector<8x128xbf16>
    %c0_11 = arith.constant 0 : index
    %c0_12 = arith.constant 0 : index
    %19 = vector.load %arg6[%c0_11, %c0_12] : memref<128x128xbf16, #tpu.memory_space<vmem>>, vector<128x128xbf16>
    %cst_13 = arith.constant dense<0.000000e+00> : vector<8x128xf32>
    %20 = tpu.matmul %18, %19, %cst_13 {dimension_numbers = #tpu.dot_dimension_numbers<[1], [0], [0], [1], [0, 0, 1, 1], [], []>} : vector<8x128xbf16>, vector<128x128xbf16>, vector<8x128xf32> -> vector<8x128xf32>
    %c0_14 = arith.constant 0 : index
    %c0_15 = arith.constant 0 : index
    %21 = vector.load %arg7[%c0_14, %c0_15] : memref<1x128xf32, #tpu.memory_space<vmem>>, vector<1x128xf32>
    %22 = vector.broadcast %21 : vector<1x128xf32> to vector<8x128xf32>
    %23 = arith.addf %20, %22 : vector<8x128xf32>
    %cst_16 = arith.constant dense<0xFF800000> : vector<8xf32>
    %24 = vector.multi_reduction <maximumf>, %23, %cst_16 [1] : vector<8x128xf32> to vector<8xf32>
    %25 = vector.shape_cast %24 : vector<8xf32> to vector<8x1xf32>
    %26 = vector.broadcast %25 : vector<8x1xf32> to vector<8x128xf32>
    %27 = arith.subf %23, %26 : vector<8x128xf32>
    %28 = math.exp %27 : vector<8x128xf32>
    %cst_17 = arith.constant dense<0.000000e+00> : vector<8xf32>
    %29 = vector.multi_reduction <add>, %28, %cst_17 [1] : vector<8x128xf32> to vector<8xf32>
    %30 = vector.shape_cast %29 : vector<8xf32> to vector<8x1xf32>
    %31 = tpu.reciprocal %30 {approx = true} : vector<8x1xf32> -> vector<8x1xf32>
    %32 = vector.broadcast %31 : vector<8x1xf32> to vector<8x128xf32>
    %33 = arith.mulf %28, %32 : vector<8x128xf32>
    %c0_18 = arith.constant 0 : index
    %c0_19 = arith.constant 0 : index
    %34 = vector.load %arg8[%c0_18, %c0_19] : memref<8x128xf32, #tpu.memory_space<vmem>>, vector<8x128xf32>
    tpu.vector_store %arg8[%c0_18, %c0_19], %33 {strides = array<i32>} : memref<8x128xf32, #tpu.memory_space<vmem>>, vector<8x128xf32>,
    return
  }
  func.func @transform_0(%arg0: i32) -> (i32, i32) {
    %c0_i32 = arith.constant 0 : i32
    %c0_i32_0 = arith.constant 0 : i32
    return %arg0, %c0_i32 : i32, i32
  }
  func.func @transform_1(%arg0: i32) -> (i32, i32) {
    %c0_i32 = arith.constant 0 : i32
    %c0_i32_0 = arith.constant 0 : i32
    %c0_i32_1 = arith.constant 0 : i32
    return %c0_i32, %c0_i32_0 : i32, i32
  }
  func.func @transform_2(%arg0: i32) -> (i32, i32) {
    %c0_i32 = arith.constant 0 : i32
    %c0_i32_0 = arith.constant 0 : i32
    %c0_i32_1 = arith.constant 0 : i32
    return %c0_i32, %c0_i32_0 : i32, i32
  }
  func.func @transform_3(%arg0: i32) -> (i32, i32) {
    %c0_i32 = arith.constant 0 : i32
    %c0_i32_0 = arith.constant 0 : i32
    %c0_i32_1 = arith.constant 0 : i32
    return %c0_i32, %c0_i32_0 : i32, i32
  }
  func.func @transform_4(%arg0: i32) -> (i32, i32) {
    %c0_i32 = arith.constant 0 : i32
    %c0_i32_0 = arith.constant 0 : i32
    %c0_i32_1 = arith.constant 0 : i32
    return %c0_i32, %c0_i32_0 : i32, i32
  }
  func.func @transform_5(%arg0: i32) -> (i32, i32) {
    %c0_i32 = arith.constant 0 : i32
    %c0_i32_0 = arith.constant 0 : i32
    %c0_i32_1 = arith.constant 0 : i32
    return %c0_i32, %c0_i32_0 : i32, i32
  }
  func.func @transform_6(%arg0: i32) -> (i32, i32) {
    %c0_i32 = arith.constant 0 : i32
    %c0_i32_0 = arith.constant 0 : i32
    %c0_i32_1 = arith.constant 0 : i32
    return %c0_i32, %c0_i32_0 : i32, i32
  }
  func.func @transform_7(%arg0: i32) -> (i32, i32) {
    %c0_i32 = arith.constant 0 : i32
    %c0_i32_0 = arith.constant 0 : i32
    return %arg0, %c0_i32 : i32, i32
  }
}

</mosaic_0001>

<llo_original>
// kernel: tpu_custom_call.1
$region0: #{tpu_custom_call.1}
  #allocation0 [shape = 'u32[]', space=smem, size = 0x4, offset = 0x4, fixed_abs, tag = 'smem constant byte address 0x4 - core index']
  #allocation1 [shape = 'u32[144,128]{1,0:T(1,128)}', space=vmem, size = 0x12000, scoped, tag = 'internal scratch']
  %s0 = inlined_call_operand.vmem [shape: f32[8,1], index: 0, kind: input, shape index: {}]
  %s1 = inlined_call_operand.vmem [shape: f32[1,128], index: 1, kind: input, shape index: {}]
  %s2 = inlined_call_operand.vmem [shape: f32[1,128], index: 2, kind: input, shape index: {}]
  %s3 = inlined_call_operand.hbm [shape: bf16[128,128], index: 3, kind: input, shape index: {}]
  %s4 = inlined_call_operand.vmem [shape: f32[1,128], index: 4, kind: input, shape index: {}]
  %s5 = inlined_call_operand.hbm [shape: bf16[128,128], index: 5, kind: input, shape index: {}]
  %s6 = inlined_call_operand.vmem [shape: f32[1,128], index: 6, kind: input, shape index: {}]
  %s7 = inlined_call_operand.hbm [shape: f32[8,128], index: 7, kind: output, shape index: {}]
  %s8 = sld [smem:[#allocation0]]
  $region46: #{tpu_custom_call.1} parent=0
    _
  %s10 = ssub.s32 1, %s8
  %s11 = scalar_select 0, %s10, %s8
  $region1: #{tpu_custom_call.1} parent=0
    #allocation2 [shape = 'u8[32768]{0}', space=vmem, size = 0x8000, scoped, tag = 'input window, operand 3, single buffered']
    #allocation3 [shape = 's32[1]{0}', space=sflag, size = 0x4, scoped, tag = 'scoped memory for tpu_custom_call.1']
    #allocation4 [shape = 's32[1]{0}', space=sflag, size = 0x4, scoped, tag = 'scoped memory for tpu_custom_call.1']
    #allocation5 [shape = 'u8[32768]{0}', space=vmem, size = 0x8000, scoped, tag = 'input window, operand 5, single buffered']
    #allocation6 [shape = 's32[1]{0}', space=sflag, size = 0x4, scoped, tag = 'scoped memory for tpu_custom_call.1']
    #allocation7 [shape = 'u8[4096]{0}', space=vmem, size = 0x1000, scoped, tag = 'output window, operand 0, single buffered']
    %12 = vsyncpa [#allocation3], 0
    %13 = vsyncpa [#allocation6], 0
    %14 = vsyncpa [#allocation4], 0
    // Predicated region
    $region2: #{tpu_custom_call.1} parent=1 // pred_check
      _
    $region3: #{tpu_custom_call.1} parent=1 // pred_check_branch
      %16 = sbr.rel (0) target = $region5
    $region4: #{tpu_custom_call.1} parent=1 // pred_region
      _
    $region5: #{tpu_custom_call.1} parent=1 // pred_fallthru
      _
    // Predicated region
    $region6: #{tpu_custom_call.1} parent=1 // pred_check
      _
    $region7: #{tpu_custom_call.1} parent=1 // pred_check_branch
      %18 = sbr.rel (0) target = $region9
    $region8: #{tpu_custom_call.1} parent=1 // pred_region
      _
    $region9: #{tpu_custom_call.1} parent=1 // pred_fallthru
      _
    // Predicated region
    $region10: #{tpu_custom_call.1} parent=1 // pred_check
      _
    $region11: #{tpu_custom_call.1} parent=1 // pred_check_branch
      %20 = sbr.rel (0) target = $region13
    $region12: #{tpu_custom_call.1} parent=1 // pred_region
      _
    $region13: #{tpu_custom_call.1} parent=1 // pred_fallthru
      _
    // Predicated region
    $region14: #{tpu_custom_call.1} parent=1 // pred_check
      _
    $region15: #{tpu_custom_call.1} parent=1 // pred_check_branch
      %22 = sbr.rel (0) target = $region17
    $region16: #{tpu_custom_call.1} parent=1 // pred_region
      %s24 = ssub.s32 1024, 1024
      %25 = vsyncadd [#allocation3], %s24
      %s26 = sshll.u32 [#allocation2], 4
      %s27 = int_to_ptr.vmem [resolvable:$true] %s26
      %32 = dma.hbm_to_vmem [thread:$0]  %s3, 1024, %s27, [#allocation3], 64, 64, 4
    $region17: #{tpu_custom_call.1} parent=1 // pred_fallthru
      _
    // Predicated region
    $region18: #{tpu_custom_call.1} parent=1 // pred_check
      _
    $region19: #{tpu_custom_call.1} parent=1 // pred_check_branch
      %34 = sbr.rel (0) target = $region21
    $region20: #{tpu_custom_call.1} parent=1 // pred_region
      _
    $region21: #{tpu_custom_call.1} parent=1 // pred_fallthru
      _
    // Predicated region
    $region22: #{tpu_custom_call.1} parent=1 // pred_check
      _
    $region23: #{tpu_custom_call.1} parent=1 // pred_check_branch
      %36 = sbr.rel (0) target = $region25
    $region24: #{tpu_custom_call.1} parent=1 // pred_region
      %s38 = ssub.s32 1024, 1024
      %39 = vsyncadd [#allocation6], %s38
      %s40 = sshll.u32 [#allocation5], 4
      %s41 = int_to_ptr.vmem [resolvable:$true] %s40
      %46 = dma.hbm_to_vmem [thread:$0]  %s5, 1024, %s41, [#allocation6], 64, 64, 4
    $region25: #{tpu_custom_call.1} parent=1 // pred_fallthru
      _
    // Predicated region
    $region26: #{tpu_custom_call.1} parent=1 // pred_check
      _
    $region27: #{tpu_custom_call.1} parent=1 // pred_check_branch
      %48 = sbr.rel (0) target = $region29
    $region28: #{tpu_custom_call.1} parent=1 // pred_region
      _
    $region29: #{tpu_custom_call.1} parent=1 // pred_fallthru
      _
    // Predicated region
    $region30: #{tpu_custom_call.1} parent=1 // pred_check
      _
    $region31: #{tpu_custom_call.1} parent=1 // pred_check_branch
      %50 = sbr.rel (0) target = $region33
    $region32: #{tpu_custom_call.1} parent=1 // pred_region
      %51 = dma.done [#allocation3], 1024
    $region33: #{tpu_custom_call.1} parent=1 // pred_fallthru
      _
    // Predicated region
    $region34: #{tpu_custom_call.1} parent=1 // pred_check
      _
    $region35: #{tpu_custom_call.1} parent=1 // pred_check_branch
      %53 = sbr.rel (0) target = $region37
    $region36: #{tpu_custom_call.1} parent=1 // pred_region
      %54 = dma.done [#allocation6], 1024
    $region37: #{tpu_custom_call.1} parent=1 // pred_fallthru
      _
    %v56 = vld [vmem:[%s0] sm:$0xff]
    %v57 = vld [vmem:[%s1] sm:$0x1]
    %59 = vset.pattern.permute.xlu0 0
    %60 = vperm.xlu0 %59, %v56
    %v61 = vpop.permute.xlu0 %60
    %v64 = vlaneseq
    %v65 = vshrl.u32 %v64, 7
    %v66 = vsub.s32 0, %v65
    %v67 = vrot.slane %v57, %v66
    %v69 = vmul.f32 %v61, %v67
    %v70 = vld [vmem:[%s2] sm:$0x1]
    %v72 = vlaneseq
    %v73 = vshrl.u32 %v72, 7
    %v74 = vsub.s32 0, %v73
    %v75 = vrot.slane %v70, %v74
    %v77 = vadd.f32 %v69, %v75
    %v78 = vmax.f32 %v77, 0.0
    %v79 = vpack.c.bf16 %v78, %v78
    %v80 = vld [vmem:[#allocation2] sm:$0xf]
    %v81 = vld [vmem:[#allocation2 + $0x4] sm:$0xf]
    %v82 = vld [vmem:[#allocation2 + $0x8] sm:$0xf]
    %v83 = vld [vmem:[#allocation2 + $0xc] sm:$0xf]
    %v84 = vld [vmem:[#allocation2 + $0x10] sm:$0xf]
    %v85 = vld [vmem:[#allocation2 + $0x14] sm:$0xf]
    %v86 = vld [vmem:[#allocation2 + $0x18] sm:$0xf]
    %v87 = vld [vmem:[#allocation2 + $0x1c] sm:$0xf]
    %v88 = vld [vmem:[#allocation2 + $0x20] sm:$0xf]
    %v89 = vld [vmem:[#allocation2 + $0x24] sm:$0xf]
    %v90 = vld [vmem:[#allocation2 + $0x28] sm:$0xf]
    %v91 = vld [vmem:[#allocation2 + $0x2c] sm:$0xf]
    %v92 = vld [vmem:[#allocation2 + $0x30] sm:$0xf]
    %v93 = vld [vmem:[#allocation2 + $0x34] sm:$0xf]
    %v94 = vld [vmem:[#allocation2 + $0x38] sm:$0xf]
    %v95 = vld [vmem:[#allocation2 + $0x3c] sm:$0xf]
    %v96 = vld [vmem:[%s4] sm:$0x1]
    %v98 = vlaneseq
    %v99 = vshrl.u32 %v98, 7
    %v100 = vsub.s32 0, %v99
    %v101 = vrot.slane %v96, %v100
    %v119 = vunpack.c.l.b16 %v80
    %v120 = vunpack.c.l.b16 %v81
    %v121 = vunpack.c.l.b16 %v82
    %v122 = vunpack.c.l.b16 %v83
    %v123 = vunpack.c.l.b16 %v84
    %v124 = vunpack.c.l.b16 %v85
    %v125 = vunpack.c.l.b16 %v86
    %v126 = vunpack.c.l.b16 %v87
    %v127 = vunpack.c.l.b16 %v88
    %v128 = vunpack.c.l.b16 %v89
    %v129 = vunpack.c.l.b16 %v90
    %v130 = vunpack.c.l.b16 %v91
    %v131 = vunpack.c.l.b16 %v92
    %v132 = vunpack.c.l.b16 %v93
    %v133 = vunpack.c.l.b16 %v94
    %v134 = vunpack.c.l.b16 %v95
    %v135 = vpack.c.b16 %v120, %v119
    %v136 = vpack.c.b16 %v122, %v121
    %v137 = vpack.c.b16 %v124, %v123
    %v138 = vpack.c.b16 %v126, %v125
    %v139 = vpack.c.b16 %v128, %v127
    %v140 = vpack.c.b16 %v130, %v129
    %v141 = vpack.c.b16 %v132, %v131
    %v142 = vpack.c.b16 %v134, %v133
    %151 = vmatprep.subr.bf16.mxu0 0
    %152 = vmatpush1.bf16.msra.mxu0 %v135
    %153 = vmatprep.subr.bf16.mxu0 0
    %154 = vmatpush1.bf16.msra.mxu0 %v136
    %155 = vmatprep.subr.bf16.mxu0 0
    %156 = vmatpush1.bf16.msra.mxu0 %v137
    %157 = vmatprep.subr.bf16.mxu0 0
    %158 = vmatpush1.bf16.msra.mxu0 %v138
    %159 = vmatprep.subr.bf16.mxu0 0
    %160 = vmatpush1.bf16.msra.mxu0 %v139
    %161 = vmatprep.subr.bf16.mxu0 0
    %162 = vmatpush1.bf16.msra.mxu0 %v140
    %163 = vmatprep.subr.bf16.mxu0 0
    %164 = vmatpush1.bf16.msra.mxu0 %v141
    %165 = vmatprep.subr.bf16.mxu0 0
    %166 = vmatpush1.bf16.msra.mxu0 %v142
    %167 = vmatprep.subr.bf16.mxu0 0
    %168 = vmatpush1.bf16.msra.mxu0 0
    %169 = vmatprep.subr.bf16.mxu0 0
    %170 = vmatpush1.bf16.msra.mxu0 0
    %171 = vmatprep.subr.bf16.mxu0 0
    %172 = vmatpush1.bf16.msra.mxu0 0
    %173 = vmatprep.subr.bf16.mxu0 0
    %174 = vmatpush1.bf16.msra.mxu0 0
    %175 = vmatprep.subr.bf16.mxu0 0
    %176 = vmatpush1.bf16.msra.mxu0 0
    %177 = vmatprep.subr.bf16.mxu0 0
    %178 = vmatpush1.bf16.msra.mxu0 0
    %179 = vmatprep.subr.bf16.mxu0 0
    %180 = vmatpush1.bf16.msra.mxu0 0
    %181 = vmatprep.subr.bf16.mxu0 0
    %182 = vmatpush1.bf16.msra.mxu0 0
    %183 = vmatprep.mubr.bf16.mxu0 0
    %184 = vmatmul.mubr.bf16.gmra.mrb[0].mxu0 %v79
    %v185 = vpop.f32.mrb[0].mxu0
    %v186 = vadd.f32 %v101, %v185
    %v187 = vpop.f32.mrb[0].mxu0
    %v188 = vpop.f32.mrb[0].mxu0
    %v189 = vpop.f32.mrb[0].mxu0
    %190 = vdwg.mxu0
    %v191 = vmax.f32 %v186, 0.0
    %v192 = vpack.c.bf16 %v191, %v191
    %v193 = vld [vmem:[#allocation5] sm:$0xf]
    %v194 = vld [vmem:[#allocation5 + $0x4] sm:$0xf]
    %v195 = vld [vmem:[#allocation5 + $0x8] sm:$0xf]
    %v196 = vld [vmem:[#allocation5 + $0xc] sm:$0xf]
    %v197 = vld [vmem:[#allocation5 + $0x10] sm:$0xf]
    %v198 = vld [vmem:[#allocation5 + $0x14] sm:$0xf]
    %v199 = vld [vmem:[#allocation5 + $0x18] sm:$0xf]
    %v200 = vld [vmem:[#allocation5 + $0x1c] sm:$0xf]
    %v201 = vld [vmem:[#allocation5 + $0x20] sm:$0xf]
    %v202 = vld [vmem:[#allocation5 + $0x24] sm:$0xf]
    %v203 = vld [vmem:[#allocation5 + $0x28] sm:$0xf]
    %v204 = vld [vmem:[#allocation5 + $0x2c] sm:$0xf]
    %v205 = vld [vmem:[#allocation5 + $0x30] sm:$0xf]
    %v206 = vld [vmem:[#allocation5 + $0x34] sm:$0xf]
    %v207 = vld [vmem:[#allocation5 + $0x38] sm:$0xf]
    %v208 = vld [vmem:[#allocation5 + $0x3c] sm:$0xf]
    %v209 = vld [vmem:[%s6] sm:$0x1]
    %v211 = vlaneseq
    %v212 = vshrl.u32 %v211, 7
    %v213 = vsub.s32 0, %v212
    %v214 = vrot.slane %v209, %v213
    %v232 = vunpack.c.l.b16 %v193
    %v233 = vunpack.c.l.b16 %v194
    %v234 = vunpack.c.l.b16 %v195
    %v235 = vunpack.c.l.b16 %v196
    %v236 = vunpack.c.l.b16 %v197
    %v237 = vunpack.c.l.b16 %v198
    %v238 = vunpack.c.l.b16 %v199
    %v239 = vunpack.c.l.b16 %v200
    %v240 = vunpack.c.l.b16 %v201
    %v241 = vunpack.c.l.b16 %v202
    %v242 = vunpack.c.l.b16 %v203
    %v243 = vunpack.c.l.b16 %v204
    %v244 = vunpack.c.l.b16 %v205
    %v245 = vunpack.c.l.b16 %v206
    %v246 = vunpack.c.l.b16 %v207
    %v247 = vunpack.c.l.b16 %v208
    %v248 = vpack.c.b16 %v233, %v232
    %v249 = vpack.c.b16 %v235, %v234
    %v250 = vpack.c.b16 %v237, %v236
    %v251 = vpack.c.b16 %v239, %v238
    %v252 = vpack.c.b16 %v241, %v240
    %v253 = vpack.c.b16 %v243, %v242
    %v254 = vpack.c.b16 %v245, %v244
    %v255 = vpack.c.b16 %v247, %v246
    %264 = vmatprep.subr.bf16.mxu0 0
    %265 = vmatpush1.bf16.msra.mxu0 %v248
    %266 = vmatprep.subr.bf16.mxu0 0
    %267 = vmatpush1.bf16.msra.mxu0 %v249
    %268 = vmatprep.subr.bf16.mxu0 0
    %269 = vmatpush1.bf16.msra.mxu0 %v250
    %270 = vmatprep.subr.bf16.mxu0 0
    %271 = vmatpush1.bf16.msra.mxu0 %v251
    %272 = vmatprep.subr.bf16.mxu0 0
    %273 = vmatpush1.bf16.msra.mxu0 %v252
    %274 = vmatprep.subr.bf16.mxu0 0
    %275 = vmatpush1.bf16.msra.mxu0 %v253
    %276 = vmatprep.subr.bf16.mxu0 0
    %277 = vmatpush1.bf16.msra.mxu0 %v254
    %278 = vmatprep.subr.bf16.mxu0 0
    %279 = vmatpush1.bf16.msra.mxu0 %v255
    %280 = vmatprep.subr.bf16.mxu0 0
    %281 = vmatpush1.bf16.msra.mxu0 0
    %282 = vmatprep.subr.bf16.mxu0 0
    %283 = vmatpush1.bf16.msra.mxu0 0
    %284 = vmatprep.subr.bf16.mxu0 0
    %285 = vmatpush1.bf16.msra.mxu0 0
    %286 = vmatprep.subr.bf16.mxu0 0
    %287 = vmatpush1.bf16.msra.mxu0 0
    %288 = vmatprep.subr.bf16.mxu0 0
    %289 = vmatpush1.bf16.msra.mxu0 0
    %290 = vmatprep.subr.bf16.mxu0 0
    %291 = vmatpush1.bf16.msra.mxu0 0
    %292 = vmatprep.subr.bf16.mxu0 0
    %293 = vmatpush1.bf16.msra.mxu0 0
    %294 = vmatprep.subr.bf16.mxu0 0
    %295 = vmatpush1.bf16.msra.mxu0 0
    %296 = vmatprep.mubr.bf16.mxu0 0
    %297 = vmatmul.mubr.bf16.gmra.mrb[0].mxu0 %v192
    %v298 = vpop.f32.mrb[0].mxu0
    %v299 = vadd.f32 %v214, %v298
    %v300 = vpop.f32.mrb[0].mxu0
    %v301 = vpop.f32.mrb[0].mxu0
    %v302 = vpop.f32.mrb[0].mxu0
    %303 = vdwg.mxu0
    %304 = vmax.xlane.f32.xlu0 %v299
    %v305 = vpop.xlane.xlu0 %304
    %v306 = vsub.f32 %v299, %v305
    %v307 = vmul.f32 %v306, 1.442695
    %v308 = vpow.pop %v307
    %309 = vadd.xlane.f32.xlu0 %v308
    %v310 = vpop.xlane.xlu0 %309
    %v311 = vrcp.pop %v310
    %v312 = vmul.f32 %v308, %v311
    %313 = vst [vmem:[#allocation7] sm:$0xff] %v312
    // Predicated region
    $region38: #{tpu_custom_call.1} parent=1 // pred_check
      _
    $region39: #{tpu_custom_call.1} parent=1 // pred_check_branch
      %315 = sbr.rel (0) target = $region41
    $region40: #{tpu_custom_call.1} parent=1 // pred_region
      %s317 = ssub.s32 128, 128
      %318 = vsyncadd [#allocation4], %s317
      %s320 = sshll.u32 [#allocation7], 4
      %s321 = int_to_ptr.vmem [resolvable:$true] %s320
      %323 = dma.vmem_to_hbm [thread:$0]  %s321, 128, %s7, [#allocation4]
    $region41: #{tpu_custom_call.1} parent=1 // pred_fallthru
      _
    // Predicated region
    $region42: #{tpu_custom_call.1} parent=1 // pred_check
      _
    $region43: #{tpu_custom_call.1} parent=1 // pred_check_branch
      %325 = sbr.rel (0) target = $region45
    $region44: #{tpu_custom_call.1} parent=1 // pred_region
      %326 = dma.done [#allocation4], 128
    $region45: #{tpu_custom_call.1} parent=1 // pred_fallthru
      _
    %327 = vsyncpa [#allocation3], 1
    %328 = vsyncpa [#allocation6], 1
    %329 = vsyncpa [#allocation4], 1

</llo_original>
